<compile_context>
chip_gen: v5e
topology: v5e:2x2
jax: 0.10.0
libtpu: 0.0.40
codegen_flags: <defaults>
</compile_context>

<pallas_src>
import jax
import jax.numpy as jnp
from jax.experimental import pallas as pl
from jax.experimental.pallas import tpu as pltpu

NUM_CLASSES = 16          # "labels" loss input_size
TIME_SIZE = 1             # "timestamps" loss input_size
INPUT_SIZE = NUM_CLASSES + TIME_SIZE

_MAX_TILE_L = 8192        # tokens per grid step along L (multiple of 128);
                          # lane-dense tile is ~0.6 MiB -> fits double-buffered
                          # in v5e's 16 MiB scoped VMEM and v7x's 32 MiB default.


def _next_item_loss_kernel(seq_lens_ref, outputs_ref, labels_ref, ts_ref, part_ref):
    """One (batch row, L-tile) grid step: masked CE / SE partial sums.

    outputs_ref block: (1, D, tile_l)  -- classes on sublanes, tokens on lanes.
    labels_ref / ts_ref blocks: (1, 1, tile_l).
    part_ref block: (1, 1, 1, 2) = [ce_partial, se_partial] for this (b, li).
    """
    b = pl.program_id(0)
    li = pl.program_id(1)
    tile_l = outputs_ref.shape[2]

    # Cast in-kernel (inputs are DMA'd in their native dtype).
    out = outputs_ref[0].astype(jnp.float32)                    # (D, tile_l)
    labels = labels_ref[0]                                      # (1, tile_l) i32
    ts = ts_ref[0].astype(jnp.float32)                          # (1, tile_l)

    # Sequence-length mask built from the scalar-prefetched seq_lens (SMEM);
    # also masks out-of-range columns of a ragged last tile (seq_len <= L).
    seq_len = seq_lens_ref[b]
    pos = jax.lax.broadcasted_iota(jnp.int32, (1, tile_l), 1) + li * tile_l
    valid = pos < seq_len                                       # (1, tile_l) bool

    # _split_outputs: sorted field order -> labels slice [0:C], timestamps [C:C+1]
    logits = out[:NUM_CLASSES, :]                               # (C, tile_l)
    time_pred = out[NUM_CLASSES:NUM_CLASSES + TIME_SIZE, :]     # (1, tile_l)

    # ---- cross-entropy for "labels" (log-softmax + one-hot select) ----
    m = jnp.max(logits, axis=0, keepdims=True)                  # (1, tile_l)
    lse = m + jnp.log(jnp.sum(jnp.exp(logits - m), axis=0, keepdims=True))
    cls_iota = jax.lax.broadcasted_iota(jnp.int32, logits.shape, 0)
    tgt_logit = jnp.sum(jnp.where(cls_iota == labels, logits, 0.0),
                        axis=0, keepdims=True)                  # (1, tile_l)
    # Select (not multiply) so garbage/NaN at padded positions cannot leak in.
    ce = jnp.where(valid, lse - tgt_logit, 0.0)                 # (1, tile_l)

    # ---- squared error for "timestamps" ----
    diff = time_pred - ts
    se = jnp.where(valid, diff * diff, 0.0)                     # (1, tile_l)

    # ---- per-(b, li) partial sums; no cross-step accumulation, no divides ----
    ce_sum = jnp.sum(ce, axis=1, keepdims=True)                 # (1, 1)
    se_sum = jnp.sum(se, axis=1, keepdims=True)                 # (1, 1)
    part_ref[...] = jnp.concatenate([ce_sum, se_sum], axis=1).reshape(1, 1, 1, 2)


class NextItemLossPallas:
    """JAX/Pallas equivalent of NextItemLoss.forward with the synthetic sub-losses."""

    def __init__(self):
        self._order = ["labels", "timestamps"]   # sorted(losses)
        self._input_sizes = {"labels": NUM_CLASSES, "timestamps": TIME_SIZE}

    @property
    def fields(self):
        return self._order

    @property
    def input_size(self):
        return sum(self._input_sizes[n] for n in self._order)

    def forward(self, payload, outputs, seq_lens, reduction="mean", max_tile_l=None):
        """payload: dict of (B, L) targets; outputs: (B, L, D); seq_lens: (B,)."""
        assert reduction == "mean"
        B, L, D = outputs.shape
        assert D == self.input_size, "Predictions tensor has inconsistent size."

        max_tile = _MAX_TILE_L if max_tile_l is None else max_tile_l
        tile_l = min(L, max_tile)            # full L if small, else a 128-multiple
        n_l = pl.cdiv(L, tile_l)             # ragged last tile masked in-kernel

        # Lane-dense presentation: tokens on the lane axis.
        # One wrapper transpose of the big tensor (guaranteed lowering); labels /
        # timestamps are metadata-only reshapes.  No wrapper-side dtype cast.
        outputs_t = jnp.transpose(outputs, (0, 2, 1))                     # (B, D, L)
        labels3 = payload["labels"].astype(jnp.int32).reshape(B, 1, L)    # (B, 1, L)
        ts3 = payload["timestamps"].reshape(B, 1, L)                      # (B, 1, L)
        seq_lens_i32 = seq_lens.astype(jnp.int32)

        grid_spec = pltpu.PrefetchScalarGridSpec(
            num_scalar_prefetch=1,          # seq_lens -> SMEM, used by the kernel
            grid=(B, n_l),
            in_specs=[
                pl.BlockSpec((1, D, tile_l), lambda b, li, sl: (b, 0, li)),  # outputs
                pl.BlockSpec((1, 1, tile_l), lambda b, li, sl: (b, 0, li)),  # labels
                pl.BlockSpec((1, 1, tile_l), lambda b, li, sl: (b, 0, li)),  # timestamps
            ],
            out_specs=pl.BlockSpec((1, 1, 1, 2), lambda b, li, sl: (b, li, 0, 0)),
        )

        cost = pl.CostEstimate(
            flops=int(B) * int(L) * (6 * NUM_CLASSES + 10),
            transcendentals=int(B) * int(L) * (NUM_CLASSES + 1),
            bytes_accessed=int(B) * int(L) * (D + 2) * 4 + int(B) * 4
                           + int(B) * int(n_l) * 2 * 4,
        )

        partials = pl.pallas_call(
            _next_item_loss_kernel,
            out_shape=jax.ShapeDtypeStruct((B, n_l, 1, 2), jnp.float32),
            grid_spec=grid_spec,
            compiler_params=pltpu.CompilerParams(
                dimension_semantics=("parallel", "parallel"),   # both axes independent
                vmem_limit_bytes=32 * 1024 * 1024),
            cost_estimate=cost,
        )(seq_lens_i32, outputs_t, labels3, ts3)

        # reduction='mean': masked mean over valid positions.  Denominator comes
        # straight from seq_lens (no in-kernel count).  When every seq_len == L
        # this equals the module's mask=None plain-mean path.
        denom = jnp.sum(jnp.clip(seq_lens_i32, 0, L).astype(jnp.float32))
        # Guard for all-empty sequences: returns 0 here, whereas the PyTorch
        # module would produce NaN (0/0).  Intentional, documented difference.
        denom = jnp.maximum(denom, 1.0)

        losses = {
            "labels": jnp.sum(partials[..., 0]) / denom,
            "timestamps": jnp.sum(partials[..., 1]) / denom,
        }
        metrics = {}  # TODO(synk): per-sub-loss metrics depend on sub-loss classes not given.
        return losses, metrics

    __call__ = forward


def _reference(payload, outputs, seq_lens):
    """Pure-JAX reference of the same semantics, for validation."""
    B, L, D = outputs.shape
    mask = (jnp.arange(L)[None, :] < seq_lens[:, None]).astype(jnp.float32)
    logits = outputs[..., :NUM_CLASSES]
    time_pred = outputs[..., NUM_CLASSES]
    logp = jax.nn.log_softmax(logits, axis=-1)
    ce = -jnp.take_along_axis(logp, payload["labels"][..., None], axis=-1)[..., 0]
    se = (time_pred - payload["timestamps"]) ** 2
    denom = jnp.sum(mask)
    return jnp.sum(ce * mask) / denom, jnp.sum(se * mask) / denom


def _run_case(loss_mod, key, B, L, seq_lens, max_tile_l=None):
    k1, k2, k3 = jax.random.split(key, 3)
    outputs = jax.random.normal(k1, (B, L, INPUT_SIZE), dtype=jnp.float32)
    payload = {
        "labels": jax.random.randint(k2, (B, L), 0, NUM_CLASSES, dtype=jnp.int32),
        "timestamps": jax.random.uniform(k3, (B, L), dtype=jnp.float32) * 10.0,
    }
    losses, _ = loss_mod(payload, outputs, seq_lens, reduction="mean",
                         max_tile_l=max_tile_l)
    losses = jax.block_until_ready(losses)
    ref_ce, ref_mse = _reference(payload, outputs, seq_lens)
    assert jnp.allclose(losses["labels"], ref_ce, rtol=1e-3, atol=1e-3), (
        losses["labels"], ref_ce)
    assert jnp.allclose(losses["timestamps"], ref_mse, rtol=1e-3, atol=1e-3), (
        losses["timestamps"], ref_mse)


if __name__ == "__main__":
    loss_mod = NextItemLossPallas()
    key = jax.random.PRNGKey(0)
    kA, kB = jax.random.split(key)

    # Case 1: small shapes, single tile, seq_len-mask path exercised.
    B, L = 2, 8
    _run_case(loss_mod, kA, B, L, jnp.array([L, 5], dtype=jnp.int32))

    # Case 2: multi-tile grid with a ragged last tile (tile_l=128 over L=300).
    B2, L2 = 2, 300
    _run_case(loss_mod, kB, B2, L2, jnp.array([300, 170], dtype=jnp.int32),
              max_tile_l=128)

    print("KERNEL_OK")
</pallas_src>

<mosaic_0001>
module attributes {stable_mosaic.version = 11 : i64} {
  func.func @_next_item_loss_kernel(%arg0: i32, %arg1: i32, %arg2: memref<2xi32, #tpu.memory_space<smem>>, %arg3: memref<1x17x8xf32, #tpu.memory_space<vmem>>, %arg4: memref<1x1x8xi32, #tpu.memory_space<vmem>>, %arg5: memref<1x1x8xf32, #tpu.memory_space<vmem>>, %arg6: memref<1x1x1x2xf32, #tpu.memory_space<vmem>>) attributes {dimension_semantics = [#tpu.dimension_semantics<parallel>, #tpu.dimension_semantics<parallel>], iteration_bounds = array<i64: 2, 1>, scalar_prefetch = 1 : i64, scratch_operands = 0 : i64, tpu.core_type = #tpu.core_type<tc>, window_params = [{transform_indices = @transform_0, window_bounds = array<i64: 1, 17, 8>}, {transform_indices = @transform_1, window_bounds = array<i64: 1, 1, 8>}, {transform_indices = @transform_2, window_bounds = array<i64: 1, 1, 8>}, {transform_indices = @transform_3, window_bounds = array<i64: 1, 1, 1, 2>}]} {
    %c0 = arith.constant 0 : index
    %c0_0 = arith.constant 0 : index
    %c0_1 = arith.constant 0 : index
    %0 = vector.load %arg3[%c0, %c0_0, %c0_1] : memref<1x17x8xf32, #tpu.memory_space<vmem>>, vector<1x17x8xf32>
    %1 = vector.shape_cast %0 : vector<1x17x8xf32> to vector<17x8xf32>
    %c0_2 = arith.constant 0 : index
    %c0_3 = arith.constant 0 : index
    %c0_4 = arith.constant 0 : index
    %2 = vector.load %arg4[%c0_2, %c0_3, %c0_4] : memref<1x1x8xi32, #tpu.memory_space<vmem>>, vector<1x1x8xi32>
    %3 = vector.shape_cast %2 : vector<1x1x8xi32> to vector<1x8xi32>
    %c0_5 = arith.constant 0 : index
    %c0_6 = arith.constant 0 : index
    %c0_7 = arith.constant 0 : index
    %4 = vector.load %arg5[%c0_5, %c0_6, %c0_7] : memref<1x1x8xf32, #tpu.memory_space<vmem>>, vector<1x1x8xf32>
    %5 = vector.shape_cast %4 : vector<1x1x8xf32> to vector<1x8xf32>
    %6 = arith.index_cast %arg0 : i32 to index
    %7 = memref.load %arg2[%6] : memref<2xi32, #tpu.memory_space<smem>>
    %8 = tpu.iota {dimensions = array<i32: 1>} : vector<1x8xi32>
    %c8_i32 = arith.constant 8 : i32
    %9 = arith.muli %arg1, %c8_i32 : i32
    %10 = vector.broadcast %9 : i32 to vector<1x8xi32>
    %11 = arith.addi %8, %10 : vector<1x8xi32>
    %12 = vector.broadcast %7 : i32 to vector<1x8xi32>
    %13 = arith.cmpi slt, %11, %12 : vector<1x8xi32>
    %14 = vector.extract_strided_slice %1 {offsets = [0, 0], sizes = [16, 8], strides = [1, 1]} : vector<17x8xf32> to vector<16x8xf32>
    %15 = vector.extract_strided_slice %1 {offsets = [16, 0], sizes = [1, 8], strides = [1, 1]} : vector<17x8xf32> to vector<1x8xf32>
    %cst = arith.constant dense<0xFF800000> : vector<8xf32>
    %16 = vector.multi_reduction <maximumf>, %14, %cst [0] : vector<16x8xf32> to vector<8xf32>
    %17 = vector.shape_cast %16 : vector<8xf32> to vector<1x8xf32>
    %18 = vector.broadcast %17 : vector<1x8xf32> to vector<16x8xf32>
    %19 = arith.subf %14, %18 : vector<16x8xf32>
    %20 = math.exp %19 : vector<16x8xf32>
    %cst_8 = arith.constant dense<0.000000e+00> : vector<8xf32>
    %21 = vector.multi_reduction <add>, %20, %cst_8 [0] : vector<16x8xf32> to vector<8xf32>
    %22 = vector.shape_cast %21 : vector<8xf32> to vector<1x8xf32>
    %23 = math.log %22 : vector<1x8xf32>
    %24 = arith.addf %17, %23 : vector<1x8xf32>
    %25 = tpu.iota {dimensions = array<i32: 0>} : vector<16x8xi32>
    %26 = vector.broadcast %3 : vector<1x8xi32> to vector<16x8xi32>
    %27 = arith.cmpi eq, %25, %26 : vector<16x8xi32>
    %cst_9 = arith.constant 0.000000e+00 : f32
    %28 = vector.broadcast %cst_9 : f32 to vector<16x8xf32>
    %29 = arith.select %27, %14, %28 : vector<16x8xi1>, vector<16x8xf32>
    %cst_10 = arith.constant dense<0.000000e+00> : vector<8xf32>
    %30 = vector.multi_reduction <add>, %29, %cst_10 [0] : vector<16x8xf32> to vector<8xf32>
    %31 = vector.shape_cast %30 : vector<8xf32> to vector<1x8xf32>
    %32 = arith.subf %24, %31 : vector<1x8xf32>
    %cst_11 = arith.constant 0.000000e+00 : f32
    %33 = vector.broadcast %cst_11 : f32 to vector<1x8xf32>
    %34 = arith.select %13, %32, %33 : vector<1x8xi1>, vector<1x8xf32>
    %35 = arith.subf %15, %5 : vector<1x8xf32>
    %36 = arith.mulf %35, %35 : vector<1x8xf32>
    %cst_12 = arith.constant 0.000000e+00 : f32
    %37 = vector.broadcast %cst_12 : f32 to vector<1x8xf32>
    %38 = arith.select %13, %36, %37 : vector<1x8xi1>, vector<1x8xf32>
    %cst_13 = arith.constant dense<0.000000e+00> : vector<1xf32>
    %39 = vector.multi_reduction <add>, %34, %cst_13 [1] : vector<1x8xf32> to vector<1xf32>
    %40 = vector.shape_cast %39 : vector<1xf32> to vector<1x1xf32>
    %cst_14 = arith.constant dense<0.000000e+00> : vector<1xf32>
    %41 = vector.multi_reduction <add>, %38, %cst_14 [1] : vector<1x8xf32> to vector<1xf32>
    %42 = vector.shape_cast %41 : vector<1xf32> to vector<1x1xf32>
    %43 = tpu.concatenate %40, %42 in 1 : vector<1x1xf32>, vector<1x1xf32> -> vector<1x2xf32>
    %44 = vector.shape_cast %43 : vector<1x2xf32> to vector<1x1x1x2xf32>
    %c0_15 = arith.constant 0 : index
    %c0_16 = arith.constant 0 : index
    %c0_17 = arith.constant 0 : index
    %c0_18 = arith.constant 0 : index
    %45 = vector.load %arg6[%c0_15, %c0_16, %c0_17, %c0_18] : memref<1x1x1x2xf32, #tpu.memory_space<vmem>>, vector<1x1x1x2xf32>
    tpu.vector_store %arg6[%c0_15, %c0_16, %c0_17, %c0_18], %44 {strides = array<i32>} : memref<1x1x1x2xf32, #tpu.memory_space<vmem>>, vector<1x1x1x2xf32>,
    return
  }
  func.func @transform_0(%arg0: i32, %arg1: i32, %arg2: memref<2xi32, #tpu.memory_space<smem>>) -> (i32, i32, i32) {
    %c0_i32 = arith.constant 0 : i32
    %c0_i32_0 = arith.constant 0 : i32
    return %arg0, %c0_i32, %arg1 : i32, i32, i32
  }
  func.func @transform_1(%arg0: i32, %arg1: i32, %arg2: memref<2xi32, #tpu.memory_space<smem>>) -> (i32, i32, i32) {
    %c0_i32 = arith.constant 0 : i32
    %c0_i32_0 = arith.constant 0 : i32
    return %arg0, %c0_i32, %arg1 : i32, i32, i32
  }
  func.func @transform_2(%arg0: i32, %arg1: i32, %arg2: memref<2xi32, #tpu.memory_space<smem>>) -> (i32, i32, i32) {
    %c0_i32 = arith.constant 0 : i32
    %c0_i32_0 = arith.constant 0 : i32
    return %arg0, %c0_i32, %arg1 : i32, i32, i32
  }
  func.func @transform_3(%arg0: i32, %arg1: i32, %arg2: memref<2xi32, #tpu.memory_space<smem>>) -> (i32, i32, i32, i32) {
    %c0_i32 = arith.constant 0 : i32
    %c0_i32_0 = arith.constant 0 : i32
    %c0_i32_1 = arith.constant 0 : i32
    return %arg0, %arg1, %c0_i32, %c0_i32_0 : i32, i32, i32, i32
  }
}

</mosaic_0001>

<llo_original>
// kernel: tpu_custom_call.1
$region0: #{tpu_custom_call.1}
  #allocation0 [shape = 'u32[]', space=smem, size = 0x4, offset = 0x4, fixed_abs, tag = 'smem constant byte address 0x4 - core index']
  #allocation1 [shape = 'u32[72,128]{1,0:T(1,128)}', space=vmem, size = 0x9000, scoped, tag = 'internal scratch']
  #allocation2 [shape = 's32[1]{0}', space=sflag, size = 0x4, scoped, tag = 'scoped memory for tpu_custom_call.1']
  #allocation3 [shape = 'u8[512]{0}', space=smem, size = 0x200, scoped, tag = 'prefetched SMEM operand 0']
  %s0 = inlined_call_operand.vmem [shape: s32[2], index: 0, kind: input, shape index: {}]
  %s1 = inlined_call_operand.vmem [shape: f32[2,17,8], index: 1, kind: input, shape index: {}]
  %s2 = inlined_call_operand.vmem [shape: s32[2,1,8], index: 2, kind: input, shape index: {}]
  %s3 = inlined_call_operand.vmem [shape: f32[2,1,8], index: 3, kind: input, shape index: {}]
  %s4 = inlined_call_operand.hbm [shape: f32[2,1,1,2], index: 4, kind: output, shape index: {}]
  %s5 = sld [smem:[#allocation0]]
  $region45: #{tpu_custom_call.1} parent=0
    _
  %s7 = ssub.s32 1, %s5
  %s8 = scalar_select 0, %s7, %s5
  %s10 = sshll.u32 %s0, 4
  %s11 = int_to_ptr.vmem [resolvable:$true] %s10
  %13 = dma.vmem_to_smem %s11, 16, [#allocation3], [#allocation2]
  %15 = dma.done [#allocation2], 16
  %16 = sfence
  $region1: #{tpu_custom_call.1} parent=0
    #allocation4 [shape = 'u8[1024]{0}', space=vmem, size = 0x400, scoped, tag = 'output window, operand 0']
    #allocation5 [shape = 's32[2]{0}', space=sflag, size = 0x8, scoped, tag = 'scoped memory for tpu_custom_call.1']
    %17 = vsyncpa [#allocation5], 0
    %s18 = scalar_lea.sflag [#allocation5], 1
    %19 = vsyncpa %s18, 0
    loop: start=0, step=1, limit=4
    $region2: #{tpu_custom_call.1} parent=1 // loop_pre_header
      _
    $region3: #{tpu_custom_call.1} parent=1 // loop_header
      %s21 = sphi 0, %s25
      %p22 = scmp.ge.s32.totalorder %s21, 4
      %s28 = sphi 0, %s40
      %s29 = sphi 0, %s36
      %s30 = sphi 0, %s28
      %s31 = sphi 0, %s29
      %s32 = sphi 0, %s30
      %s33 = sphi 0, %s31
      %s45 = sphi 0, %s47
      %s48 = sphi 0, %s45
      %s49 = sphi 0, %s48
      %s65 = sphi 0, %s49
      %s73 = sphi 0, %s75
      %s76 = sphi 0, %s73
      %s77 = sphi 0, %s76
      %s93 = sphi 0, %s77
      %s101 = sphi 0, %s103
      %s104 = sphi 0, %s101
      %s105 = sphi 0, %s104
      %s121 = sphi 0, %s105
      %s129 = sphi 0, %s131
      %s132 = sphi 0, %s129
      %s133 = sphi 0, %s132
      %s149 = sphi 0, %s133
    $region4: #{tpu_custom_call.1} parent=1 // loop_header_branch
      %24 = sbr.rel (%p22) target = $region8
    $region5: #{tpu_custom_call.1} parent=1 // loop_body
      %s26 = ssub.s32 %s21, 1
      %s27 = ssub.s32 %s21, 2
      %s34 = sadd.s32 1, %s29
      %p35 = scmp.ge.s32.totalorder %s34, 1
      %s36 = scalar_select %p35, 0, %s34
      %s37 = sadd.s32 1, %s28
      %s38 = scalar_select %p35, %s37, %s28
      %p39 = scmp.ge.s32.totalorder %s38, 2
      %s40 = scalar_select %p39, 0, %s38
      %s41 = ssub.s32 %s28, %s40
      %s42 = ssub.s32 %s29, %s36
      %s43 = sor.u32 %s41, %s42
      %p44 = scmp.eq.s32.totalorder %s43, 0
      %s46 = sadd.s32 %s45, 1
      %s47 = scalar_select %p44, %s45, %s46
      %p50 = pneg %p44
      %p51 = scmp.eq.s32.totalorder %s21, 1
      %p52 = por %p50, %p51
      %p53 = scmp.ne.s32.totalorder %s45, %s48
      %p54 = scmp.eq.s32.totalorder %s21, 0
      %p55 = por %p53, %p54
      %p56 = scmp.ne.s32.totalorder %s45, %s48
      %p57 = scmp.eq.s32.totalorder %s26, 1
      %p58 = por %p56, %p57
      %p59 = scmp.ne.s32.totalorder %s48, %s49
      %p60 = scmp.eq.s32.totalorder %s26, 0
      %p61 = por %p59, %p60
      %p62 = scmp.ne.s32.totalorder %s48, %s49
      %p63 = scmp.eq.s32.totalorder %s27, 1
      %p64 = por %p62, %p63
      %p66 = scmp.ne.s32.totalorder %s49, %s65
      %p67 = scmp.eq.s32.totalorder %s27, 0
      %p68 = por %p66, %p67
      %s69 = ssub.s32 %s28, %s40
      %s70 = ssub.s32 %s29, %s36
      %s71 = sor.u32 %s69, %s70
      %p72 = scmp.eq.s32.totalorder %s71, 0
      %s74 = sadd.s32 %s73, 1
      %s75 = scalar_select %p72, %s73, %s74
      %p78 = pneg %p72
      %p79 = scmp.eq.s32.totalorder %s21, 1
      %p80 = por %p78, %p79
      %p81 = scmp.ne.s32.totalorder %s73, %s76
      %p82 = scmp.eq.s32.totalorder %s21, 0
      %p83 = por %p81, %p82
      %p84 = scmp.ne.s32.totalorder %s73, %s76
      %p85 = scmp.eq.s32.totalorder %s26, 1
      %p86 = por %p84, %p85
      %p87 = scmp.ne.s32.totalorder %s76, %s77
      %p88 = scmp.eq.s32.totalorder %s26, 0
      %p89 = por %p87, %p88
      %p90 = scmp.ne.s32.totalorder %s76, %s77
      %p91 = scmp.eq.s32.totalorder %s27, 1
      %p92 = por %p90, %p91
      %p94 = scmp.ne.s32.totalorder %s77, %s93
      %p95 = scmp.eq.s32.totalorder %s27, 0
      %p96 = por %p94, %p95
      %s97 = ssub.s32 %s28, %s40
      %s98 = ssub.s32 %s29, %s36
      %s99 = sor.u32 %s97, %s98
      %p100 = scmp.eq.s32.totalorder %s99, 0
      %s102 = sadd.s32 %s101, 1
      %s103 = scalar_select %p100, %s101, %s102
      %p106 = pneg %p100
      %p107 = scmp.eq.s32.totalorder %s21, 1
      %p108 = por %p106, %p107
      %p109 = scmp.ne.s32.totalorder %s101, %s104
      %p110 = scmp.eq.s32.totalorder %s21, 0
      %p111 = por %p109, %p110
      %p112 = scmp.ne.s32.totalorder %s101, %s104
      %p113 = scmp.eq.s32.totalorder %s26, 1
      %p114 = por %p112, %p113
      %p115 = scmp.ne.s32.totalorder %s104, %s105
      %p116 = scmp.eq.s32.totalorder %s26, 0
      %p117 = por %p115, %p116
      %p118 = scmp.ne.s32.totalorder %s104, %s105
      %p119 = scmp.eq.s32.totalorder %s27, 1
      %p120 = por %p118, %p119
      %p122 = scmp.ne.s32.totalorder %s105, %s121
      %p123 = scmp.eq.s32.totalorder %s27, 0
      %p124 = por %p122, %p123
      %s125 = ssub.s32 %s28, %s40
      %s126 = ssub.s32 %s29, %s36
      %s127 = sor.u32 %s125, %s126
      %p128 = scmp.eq.s32.totalorder %s127, 0
      %s130 = sadd.s32 %s129, 1
      %s131 = scalar_select %p128, %s129, %s130
      %p134 = pneg %p128
      %p135 = scmp.eq.s32.totalorder %s21, 1
      %p136 = por %p134, %p135
      %p137 = scmp.ne.s32.totalorder %s129, %s132
      %p138 = scmp.eq.s32.totalorder %s21, 0
      %p139 = por %p137, %p138
      %p140 = scmp.ne.s32.totalorder %s129, %s132
      %p141 = scmp.eq.s32.totalorder %s26, 1
      %p142 = por %p140, %p141
      %p143 = scmp.ne.s32.totalorder %s132, %s133
      %p144 = scmp.eq.s32.totalorder %s26, 0
      %p145 = por %p143, %p144
      %p146 = scmp.ne.s32.totalorder %s132, %s133
      %p147 = scmp.eq.s32.totalorder %s27, 1
      %p148 = por %p146, %p147
      %p150 = scmp.ne.s32.totalorder %s133, %s149
      %p151 = scmp.eq.s32.totalorder %s27, 0
      %p152 = por %p150, %p151
      %p153 = scmp.le.s32.totalorder 1, %s21
      %p154 = scmp.lt.s32.totalorder %s21, 3
      %p155 = pnand %p153, %p154
      %p156 = pneg %p155
      // Predicated region
      $region9: #{tpu_custom_call.1} parent=5 // pred_check
        _
      $region10: #{tpu_custom_call.1} parent=5 // pred_check_branch
        %158 = sbr.rel (%p155) target = $region12
      $region11: #{tpu_custom_call.1} parent=5 // pred_region
        %s159 = ssub.s32 %s21, 1
      $region12: #{tpu_custom_call.1} parent=5 // pred_fallthru
        _
      %p160 = scmp.lt.s32.totalorder %s21, 2
      // Predicated region
      $region13: #{tpu_custom_call.1} parent=5 // pred_check
        %p161 = pneg %p160
      $region14: #{tpu_custom_call.1} parent=5 // pred_check_branch
        %163 = sbr.rel (%p161) target = $region16
      $region15: #{tpu_custom_call.1} parent=5 // pred_region
        // Predicated region
        $region17: #{tpu_custom_call.1} parent=15 // pred_check
          %p164 = pneg %p55
        $region18: #{tpu_custom_call.1} parent=15 // pred_check_branch
          %166 = sbr.rel (%p164) target = $region20
        $region19: #{tpu_custom_call.1} parent=15 // pred_region
          %p167 = scmp.lt.s32.totalorder %s28, 1
          %s168 = scalar_select %p167, %s28, 1
          %p169 = scmp.lt.s32.totalorder %s29, 0
          %s170 = scalar_select %p169, %s29, 0
          %s171 = smul.addr %s168, 3
          %s172 = sadd.s32 %s170, %s171
          %s173 = smul.addr %s172, 8
          %s174 = scalar_lea.vmem %s1, %s173
        $region20: #{tpu_custom_call.1} parent=15 // pred_fallthru
          _
        // Predicated region
        $region21: #{tpu_custom_call.1} parent=15 // pred_check
          %p175 = pneg %p83
        $region22: #{tpu_custom_call.1} parent=15 // pred_check_branch
          %177 = sbr.rel (%p175) target = $region24
        $region23: #{tpu_custom_call.1} parent=15 // pred_region
          %p178 = scmp.lt.s32.totalorder %s28, 1
          %s179 = scalar_select %p178, %s28, 1
          %p180 = scmp.lt.s32.totalorder %s29, 0
          %s181 = scalar_select %p180, %s29, 0
          %s182 = sadd.s32 %s181, %s179
          %s183 = scalar_lea.vmem %s2, %s182
        $region24: #{tpu_custom_call.1} parent=15 // pred_fallthru
          _
        // Predicated region
        $region25: #{tpu_custom_call.1} parent=15 // pred_check
          %p184 = pneg %p111
        $region26: #{tpu_custom_call.1} parent=15 // pred_check_branch
          %186 = sbr.rel (%p184) target = $region28
        $region27: #{tpu_custom_call.1} parent=15 // pred_region
          %p187 = scmp.lt.s32.totalorder %s28, 1
          %s188 = scalar_select %p187, %s28, 1
          %p189 = scmp.lt.s32.totalorder %s29, 0
          %s190 = scalar_select %p189, %s29, 0
          %s191 = sadd.s32 %s190, %s188
          %s192 = scalar_lea.vmem %s3, %s191
        $region28: #{tpu_custom_call.1} parent=15 // pred_fallthru
          _
      $region16: #{tpu_custom_call.1} parent=5 // pred_fallthru
        _
      %p193 = scmp.le.s32.totalorder 1, %s21
      %p194 = scmp.lt.s32.totalorder %s21, 3
      %p195 = pnand %p193, %p194
      %p196 = pneg %p195
      // Predicated region
      $region29: #{tpu_custom_call.1} parent=5 // pred_check
        _
      $region30: #{tpu_custom_call.1} parent=5 // pred_check_branch
        %198 = sbr.rel (%p195) target = $region32
      $region31: #{tpu_custom_call.1} parent=5 // pred_region
        %s199 = ssub.s32 %s21, 1
        %p200 = scmp.lt.s32.totalorder %s30, 1
        %s201 = scalar_select %p200, %s30, 1
        %p202 = scmp.lt.s32.totalorder %s31, 0
        %s203 = scalar_select %p202, %s31, 0
        %s204 = smul.addr %s201, 3
        %s205 = sadd.s32 %s203, %s204
        %s206 = smul.addr %s205, 8
        %s207 = scalar_lea.vmem %s1, %s206
        %p208 = pneg %p61
        %p209 = pneg %p58
        %p210 = scmp.lt.s32.totalorder %s30, 1
        %s211 = scalar_select %p210, %s30, 1
        %p212 = scmp.lt.s32.totalorder %s31, 0
        %s213 = scalar_select %p212, %s31, 0
        %s214 = sadd.s32 %s213, %s211
        %s215 = scalar_lea.vmem %s2, %s214
        %p216 = pneg %p89
        %p217 = pneg %p86
        %p218 = scmp.lt.s32.totalorder %s30, 1
        %s219 = scalar_select %p218, %s30, 1
        %p220 = scmp.lt.s32.totalorder %s31, 0
        %s221 = scalar_select %p220, %s31, 0
        %s222 = sadd.s32 %s221, %s219
        %s223 = scalar_lea.vmem %s3, %s222
        %p224 = pneg %p117
        %p225 = pneg %p114
        %p226 = pneg %p145
        %p227 = pneg %p142
        %s228 = sand.u32 %s132, 1
        %s229 = scalar_lea.sflag [#allocation5], %s228
        %s230 = sand.u32 %s132, 1
        %s231 = scalar_lea.vmem [#allocation4], %s230
        %p232 = scmp.lt.s32.totalorder %s30, 1
        %s233 = scalar_select %p232, %s30, 1
        %p234 = scmp.lt.s32.totalorder %s31, 0
        %s235 = scalar_select %p234, %s31, 0
        %s236 = smul.addr %s233, 3
        %s237 = sadd.s32 %s235, %s236
        %s238 = smul.addr %s237, 8
        %s239 = scalar_lea.vmem %s1, %s238
        %p240 = scmp.lt.s32.totalorder %s30, 1
        %s241 = scalar_select %p240, %s30, 1
        %p242 = scmp.lt.s32.totalorder %s31, 0
        %s243 = scalar_select %p242, %s31, 0
        %s244 = sadd.s32 %s243, %s241
        %s245 = scalar_lea.vmem %s2, %s244
        %p246 = scmp.lt.s32.totalorder %s30, 1
        %s247 = scalar_select %p246, %s30, 1
        %p248 = scmp.lt.s32.totalorder %s31, 0
        %s249 = scalar_select %p248, %s31, 0
        %s250 = sadd.s32 %s249, %s247
        %s251 = scalar_lea.vmem %s3, %s250
        %v252 = vld [vmem:[%s239] sm:$0xff]
        %v253 = vld [vmem:[%s239 + $0x8] sm:$0xff]
        %v254 = vld [vmem:[%s239 + $0x10] sm:$0x1]
        %v255 = vld [vmem:[%s245] sm:$0x1]
        %v256 = vld [vmem:[%s251] sm:$0x1]
        %s257 = sld [smem:[#allocation3 + %s30]]
        %v258 = vlaneseq
        %v259 = vand.u32 %v258, 127
        %s260 = smul.u32 %s31, 8
        %v261 = vstv %s260
        %v262 = vadd.s32 %v259, %v261
        %v263 = vstv %s257
        %vm264 = vcmp.lt.s32.totalorder %v262, %v263
        %vm265 = vcmask 64512
        %v266 = vsel %vm265, %v252, -inf
        %v267 = vsel %vm265, %v253, -inf
        %v268 = vmax.f32 %v266, %v267
        %v269 = vrot.slane %v268, 4
        %v270 = vmax.f32 %v268, %v269
        %v271 = vrot.slane %v270, 2
        %v272 = vmax.f32 %v270, %v271
        %v273 = vrot.slane %v272, 1
        %v274 = vmax.f32 %v272, %v273
        %v275 = vsub.f32 %v252, %v274
        %v276 = vsub.f32 %v253, %v274
        %v277 = vmul.f32 %v275, 1.442695
        %v278 = vpow.pop %v277
        %v279 = vmul.f32 %v276, 1.442695
        %v280 = vpow.pop %v279
        %v281 = vsel %vm265, %v278, 0.0
        %v282 = vsel %vm265, %v280, 0.0
        %v283 = vadd.f32 %v281, %v282
        %v284 = vrot.slane %v283, 4
        %v285 = vadd.f32 %v283, %v284
        %v286 = vrot.slane %v285, 2
        %v287 = vadd.f32 %v285, %v286
        %v288 = vrot.slane %v287, 1
        %v289 = vadd.f32 %v287, %v288
        %v290 = vlog2.pop %v289
        %v291 = vmul.f32 %v290, 0.6931472
        %v292 = vadd.f32 %v274, %v291
        %v293 = vlaneseq
        %v294 = vshrl.u32 %v293, 7
        %v295 = vadd.s32 %v294, 8
        %v296 = vperm.slane %v255, 0
        %vm297 = vcmp.eq.s32.totalorder %v294, %v296
        %vm298 = vcmp.eq.s32.totalorder %v295, %v296
        %v299 = vsel %vm297, %v252, 0.0
        %v300 = vsel %vm298, %v253, 0.0
        %v301 = vsel %vm265, %v299, 0.0
        %v302 = vsel %vm265, %v300, 0.0
        %v303 = vadd.f32 %v301, %v302
        %v304 = vrot.slane %v303, 4
        %v305 = vadd.f32 %v303, %v304
        %v306 = vrot.slane %v305, 2
        %v307 = vadd.f32 %v305, %v306
        %v308 = vrot.slane %v307, 1
        %v309 = vadd.f32 %v307, %v308
        %v310 = vsub.f32 %v292, %v309
        %v311 = vsel %vm264, %v310, 0.0
        %v312 = vsub.f32 %v254, %v256
        %v313 = vmul.f32 %v312, %v312
        %v314 = vsel %vm264, %v313, 0.0
        %v315 = vsel %vm265, %v311, 0.0
        %316 = vadd.xlane.f32.xlu0 %v315
        %v317 = vpop.xlane.xlu0 %316
        %vm318 = vcmask 57344
        %v319 = vsel %vm318, %v314, 0.0
        %320 = vadd.xlane.f32.xlu0 %v319
        %v321 = vpop.xlane.xlu0 %320
        %vm322 = vcmask 7168
        %v323 = vsel %vm322, %v317, %v321
        %vm324 = vcmask 8192
        %325 = vst.msk [vmem:[%s231] sm:$0x1] %vm324, %v323
        %s326 = sand.u32 %s132, 1
        %s327 = scalar_lea.sflag [#allocation5], %s326
        %s328 = sand.u32 %s132, 1
        %s329 = scalar_lea.vmem [#allocation4], %s328
        // Predicated region
        $region33: #{tpu_custom_call.1} parent=31 // pred_check
          %p330 = pneg %p142
        $region34: #{tpu_custom_call.1} parent=31 // pred_check_branch
          %332 = sbr.rel (%p330) target = $region36
        $region35: #{tpu_custom_call.1} parent=31 // pred_region
          %334 = vsyncadd %s327, 0
          %s335 = sadd.s32 %s31, %s30
          %s336 = scalar_lea.hbm %s4, %s335
          %s338 = sshll.u32 %s329, 4
          %s339 = int_to_ptr.vmem [resolvable:$true] %s338
          %s340 = sshll.u32 %s336, 4
          %s341 = int_to_ptr.hbm [resolvable:$true] %s340
          %343 = dma.vmem_to_hbm [thread:$0]  %s339, 16, %s341, %s327
        $region36: #{tpu_custom_call.1} parent=31 // pred_fallthru
          _
      $region32: #{tpu_custom_call.1} parent=5 // pred_fallthru
        _
      %p344 = scmp.le.s32.totalorder 2, %s21
      // Predicated region
      $region37: #{tpu_custom_call.1} parent=5 // pred_check
        %p345 = pneg %p344
      $region38: #{tpu_custom_call.1} parent=5 // pred_check_branch
        %347 = sbr.rel (%p345) target = $region40
      $region39: #{tpu_custom_call.1} parent=5 // pred_region
        %s348 = ssub.s32 %s21, 2
        // Predicated region
        $region41: #{tpu_custom_call.1} parent=39 // pred_check
          %p349 = pneg %p148
        $region42: #{tpu_custom_call.1} parent=39 // pred_check_branch
          %351 = sbr.rel (%p349) target = $region44
        $region43: #{tpu_custom_call.1} parent=39 // pred_region
          %s352 = sand.u32 %s133, 1
          %s353 = scalar_lea.sflag [#allocation5], %s352
          %s354 = sand.u32 %s133, 1
          %s355 = scalar_lea.vmem [#allocation4], %s354
          %357 = dma.done %s353, 16
        $region44: #{tpu_custom_call.1} parent=39 // pred_fallthru
          _
      $region40: #{tpu_custom_call.1} parent=5 // pred_fallthru
        _
    $region6: #{tpu_custom_call.1} parent=1 // loop_footer
      %s25 = sadd.s32 1, %s21
    $region7: #{tpu_custom_call.1} parent=1 // loop_footer_branch
      %20 = sbr.rel target = $region3
    $region8: #{tpu_custom_call.1} parent=1 // loop_exit
      _
    %358 = vsyncpa [#allocation5], 1
    %s359 = scalar_lea.sflag [#allocation5], 1
    %360 = vsyncpa %s359, 1

</llo_original>
